<compile_context>
chip_gen: v7x
topology: tpu7x:2x2x1
jax: 0.10.0
libtpu: 0.0.40
codegen_flags: <defaults>
</compile_context>

<pallas_src>
import functools
import math

import jax
import jax.numpy as jnp
from jax import lax
from jax.experimental import pallas as pl
from jax.experimental.pallas import tpu as pltpu


def _label_smoothing_body(x_ref, tgt_ref, loss_ref, true_dist_ref, *,
                          num_rows, block_rows, confidence, smooth_val,
                          const_per_row):
    i = pl.program_id(0)

    # Init the resident (1,1) loss accumulator on the first grid step.
    @pl.when(i == 0)
    def _():
        loss_ref[...] = jnp.zeros_like(loss_ref)

    x = x_ref[...].astype(jnp.float32)                       # (tm, C)
    tgt = tgt_ref[...]                                       # (tm, 1) int32
    tm, C = x.shape

    # --- log-softmax over classes (numerically stable) ---
    m = jnp.max(x, axis=1, keepdims=True)                    # (tm, 1)
    z = x - m
    lse = jnp.log(jnp.sum(jnp.exp(z), axis=1, keepdims=True))  # (tm, 1)
    logp = z - lse                                            # (tm, C)

    col = lax.broadcasted_iota(jnp.int32, (tm, C), 1)
    onehot = col == tgt                                       # (tm, C) bool

    # true_dist only ever takes two trace-time-constant values.
    if true_dist_ref is not None:
        true_dist = jnp.where(onehot, jnp.float32(confidence),
                              jnp.float32(smooth_val))
        true_dist_ref[...] = true_dist.astype(true_dist_ref.dtype)

    # --- KL(true_dist || softmax(x)), 'sum' reduction, folded algebraically:
    #   sum_c t*log(t)   = const_per_row                        (trace-time)
    #   sum_c -t*logp    = -conf*logp[tgt] - smooth*(rowsum(logp) - logp[tgt])
    logp_at_tgt = jnp.sum(jnp.where(onehot, logp, 0.0), axis=1, keepdims=True)
    rowsum_logp = jnp.sum(z, axis=1, keepdims=True) - jnp.float32(C) * lse

    per_row = (jnp.float32(const_per_row)
               - jnp.float32(confidence) * logp_at_tgt
               - jnp.float32(smooth_val) * (rowsum_logp - logp_at_tgt))

    # Mask padded batch rows (N rounded up to a multiple of block_rows).
    row = lax.broadcasted_iota(jnp.int32, (tm, 1), 0) + i * block_rows
    per_row = jnp.where(row < num_rows, per_row, 0.0)

    loss_ref[...] += jnp.sum(per_row, axis=0, keepdims=True)  # (1, 1)


def _round_up(x, m):
    return ((x + m - 1) // m) * m


def label_smoothing_loss(x, target, *, size, smoothing=0.0,
                         return_true_dist=True, block_rows=None):
    """Fused Pallas TPU equivalent of the PyTorch LabelSmoothing.forward.

    Returns (loss, true_dist) if return_true_dist else loss.
    """
    N, C = x.shape
    assert C == size, "x.shape[1] must equal size (class count)"

    confidence = 1.0 - float(smoothing)
    smooth_val = float(smoothing) / (size - 1) if size > 1 else 0.0
    # Guard log(0) at trace time (0 * log 0 := 0 per KLDivLoss convention).
    log_conf = math.log(confidence) if confidence > 0.0 else 0.0
    log_smooth = math.log(smooth_val) if smooth_val > 0.0 else 0.0
    const_per_row = (confidence * log_conf
                     + (size - 1) * smooth_val * log_smooth)

    # Pick the largest batch tile whose double-buffered DMA windows
    # (x tile [+ true_dist tile]) stay around ~12 MiB: safely inside the
    # default scoped-VMEM limit on every TPU generation (incl. v7x 64 MiB).
    if block_rows is None:
        n_streams = 2 + (2 if return_true_dist else 0)   # double-buffered in/out
        bytes_per_row = max(1, C) * 4 * n_streams
        block_rows = (12 * 1024 * 1024) // bytes_per_row
        block_rows = max(8, min(512, (block_rows // 8) * 8))
    block_rows = max(8, (int(block_rows) // 8) * 8)
    block_rows = min(block_rows, _round_up(N, 8))

    n_pad = _round_up(N, block_rows)
    grid_m = n_pad // block_rows

    x_p = x if n_pad == N else jnp.pad(x, ((0, n_pad - N), (0, 0)))
    tgt = target.astype(jnp.int32).reshape(N, 1)
    tgt_p = tgt if n_pad == N else jnp.pad(tgt, ((0, n_pad - N), (0, 0)))

    body = functools.partial(
        _label_smoothing_body,
        num_rows=N, block_rows=block_rows, confidence=confidence,
        smooth_val=smooth_val, const_per_row=const_per_row)

    if return_true_dist:
        def kernel(x_ref, tgt_ref, loss_ref, td_ref):
            body(x_ref, tgt_ref, loss_ref, td_ref)
        out_shape = (jax.ShapeDtypeStruct((1, 1), jnp.float32),
                     jax.ShapeDtypeStruct((n_pad, C), jnp.float32))
        out_specs = (pl.BlockSpec((1, 1), lambda i: (0, 0)),
                     pl.BlockSpec((block_rows, C), lambda i: (i, 0)))
    else:
        def kernel(x_ref, tgt_ref, loss_ref):
            body(x_ref, tgt_ref, loss_ref, None)
        out_shape = jax.ShapeDtypeStruct((1, 1), jnp.float32)
        out_specs = pl.BlockSpec((1, 1), lambda i: (0, 0))

    grid_spec = pltpu.PrefetchScalarGridSpec(
        num_scalar_prefetch=0,
        grid=(grid_m,),
        in_specs=[pl.BlockSpec((block_rows, C), lambda i: (i, 0)),
                  pl.BlockSpec((block_rows, 1), lambda i: (i, 0))],
        out_specs=out_specs,
    )

    outs = pl.pallas_call(
        kernel,
        grid_spec=grid_spec,
        out_shape=out_shape,
        compiler_params=pltpu.CompilerParams(
            # Batch axis is a reduction axis for the resident (1,1) loss
            # accumulator, so it must be "arbitrary" (not "parallel").
            dimension_semantics=("arbitrary",)),
    )(x_p, tgt_p)

    if return_true_dist:
        loss, true_dist = outs
        return loss[0, 0], true_dist[:N]
    return outs[0, 0]


def _reference(x, target, size, smoothing):
    """Pure-JAX reference for sanity checking."""
    confidence = 1.0 - smoothing
    smooth_val = smoothing / (size - 1) if size > 1 else 0.0
    logp = jax.nn.log_softmax(x.astype(jnp.float32), axis=1)
    onehot = jax.nn.one_hot(target, size, dtype=jnp.float32)
    true_dist = onehot * confidence + (1.0 - onehot) * smooth_val
    log_t = jnp.where(true_dist > 0, jnp.log(true_dist), 0.0)
    terms = jnp.where(true_dist > 0, true_dist * (log_t - logp), 0.0)
    return jnp.sum(terms), true_dist


if __name__ == "__main__":
    key = jax.random.PRNGKey(0)

    # Case 1: shapes consistent with the module (size = class count).
    size, batch, smoothing = 8, 8, 0.1
    k1, k2, key = jax.random.split(key, 3)
    x = jax.random.normal(k1, (batch, size), dtype=jnp.float32)
    target = jax.random.randint(k2, (batch,), 0, size, dtype=jnp.int32)

    loss, true_dist = label_smoothing_loss(x, target, size=size,
                                           smoothing=smoothing)
    loss = jax.block_until_ready(loss)
    true_dist = jax.block_until_ready(true_dist)
    ref_loss, ref_td = _reference(x, target, size, smoothing)
    assert jnp.allclose(loss, ref_loss, rtol=1e-5, atol=1e-5), (loss, ref_loss)
    assert jnp.allclose(true_dist, ref_td, rtol=1e-6, atol=1e-6)

    # Case 2: multi-tile grid + batch padding (batch not a tile multiple).
    size2, batch2, smoothing2 = 16, 20, 0.2
    k1, k2, key = jax.random.split(key, 3)
    x2 = jax.random.normal(k1, (batch2, size2), dtype=jnp.float32)
    target2 = jax.random.randint(k2, (batch2,), 0, size2, dtype=jnp.int32)
    loss2, true_dist2 = label_smoothing_loss(x2, target2, size=size2,
                                             smoothing=smoothing2,
                                             block_rows=8)
    loss2 = jax.block_until_ready(loss2)
    ref_loss2, ref_td2 = _reference(x2, target2, size2, smoothing2)
    assert jnp.allclose(loss2, ref_loss2, rtol=1e-5, atol=1e-5), (loss2, ref_loss2)
    assert jnp.allclose(true_dist2, ref_td2, rtol=1e-6, atol=1e-6)

    # Case 3: loss-only fast path (no true_dist HBM write).
    loss_only = label_smoothing_loss(x2, target2, size=size2,
                                     smoothing=smoothing2,
                                     return_true_dist=False, block_rows=8)
    loss_only = jax.block_until_ready(loss_only)
    assert jnp.allclose(loss_only, ref_loss2, rtol=1e-5, atol=1e-5)

    # Case 4: smoothing == 0 edge case (log(0) guard).
    loss0, _ = label_smoothing_loss(x, target, size=size, smoothing=0.0)
    loss0 = jax.block_until_ready(loss0)
    ref_loss0, _ = _reference(x, target, size, 0.0)
    assert jnp.allclose(loss0, ref_loss0, rtol=1e-5, atol=1e-5), (loss0, ref_loss0)

    print("KERNEL_OK")
</pallas_src>

<mosaic_0001>
module attributes {stable_mosaic.version = 11 : i64} {
  func.func @kernel(%arg0: i32, %arg1: memref<8x8xf32, #tpu.memory_space<vmem>>, %arg2: memref<8x1xi32, #tpu.memory_space<vmem>>, %arg3: memref<1x1xf32, #tpu.memory_space<vmem>>, %arg4: memref<8x8xf32, #tpu.memory_space<vmem>>) attributes {dimension_semantics = [#tpu.dimension_semantics<arbitrary>], iteration_bounds = array<i64: 1>, scalar_prefetch = 0 : i64, scratch_operands = 0 : i64, tpu.core_type = #tpu.core_type<tc>, window_params = [{transform_indices = @transform_0, window_bounds = array<i64: 8, 8>}, {transform_indices = @transform_1, window_bounds = array<i64: 8, 1>}, {pipeline_mode = #tpu.pipeline_mode<synchronous>, transform_indices = @transform_2, window_bounds = array<i64: 1, 1>}, {transform_indices = @transform_3, window_bounds = array<i64: 8, 8>}]} {
    %c0_i32 = arith.constant 0 : i32
    %0 = arith.cmpi eq, %arg0, %c0_i32 : i32
    %1 = arith.extui %0 : i1 to i32
    %c0_i32_0 = arith.constant 0 : i32
    %2 = arith.cmpi ne, %1, %c0_i32_0 : i32
    scf.if %2 {
      %cst_23 = arith.constant 0.000000e+00 : f32
      %52 = vector.broadcast %cst_23 : f32 to vector<1x1xf32>
      %c0_24 = arith.constant 0 : index
      %c0_25 = arith.constant 0 : index
      %53 = vector.load %arg3[%c0_24, %c0_25] : memref<1x1xf32, #tpu.memory_space<vmem>>, vector<1x1xf32>
      tpu.vector_store %arg3[%c0_24, %c0_25], %52 {strides = array<i32>} : memref<1x1xf32, #tpu.memory_space<vmem>>, vector<1x1xf32>,
    } else {
    }
    %c0 = arith.constant 0 : index
    %c0_1 = arith.constant 0 : index
    %3 = vector.load %arg1[%c0, %c0_1] : memref<8x8xf32, #tpu.memory_space<vmem>>, vector<8x8xf32>
    %c0_2 = arith.constant 0 : index
    %c0_3 = arith.constant 0 : index
    %4 = vector.load %arg2[%c0_2, %c0_3] : memref<8x1xi32, #tpu.memory_space<vmem>>, vector<8x1xi32>
    %cst = arith.constant dense<0xFF800000> : vector<8xf32>
    %5 = vector.multi_reduction <maximumf>, %3, %cst [1] : vector<8x8xf32> to vector<8xf32>
    %6 = vector.shape_cast %5 : vector<8xf32> to vector<8x1xf32>
    %7 = vector.broadcast %6 : vector<8x1xf32> to vector<8x8xf32>
    %8 = arith.subf %3, %7 : vector<8x8xf32>
    %9 = math.exp %8 : vector<8x8xf32>
    %cst_4 = arith.constant dense<0.000000e+00> : vector<8xf32>
    %10 = vector.multi_reduction <add>, %9, %cst_4 [1] : vector<8x8xf32> to vector<8xf32>
    %11 = vector.shape_cast %10 : vector<8xf32> to vector<8x1xf32>
    %12 = math.log %11 : vector<8x1xf32>
    %13 = vector.broadcast %12 : vector<8x1xf32> to vector<8x8xf32>
    %14 = arith.subf %8, %13 : vector<8x8xf32>
    %15 = tpu.iota {dimensions = array<i32: 1>} : vector<8x8xi32>
    %16 = vector.broadcast %4 : vector<8x1xi32> to vector<8x8xi32>
    %17 = arith.cmpi eq, %15, %16 : vector<8x8xi32>
    %cst_5 = arith.constant 0.899999976 : f32
    %cst_6 = arith.constant 0.0142857144 : f32
    %18 = vector.broadcast %cst_5 : f32 to vector<8x8xf32>
    %19 = vector.broadcast %cst_6 : f32 to vector<8x8xf32>
    %20 = arith.select %17, %18, %19 : vector<8x8xi1>, vector<8x8xf32>
    %c0_7 = arith.constant 0 : index
    %c0_8 = arith.constant 0 : index
    %21 = vector.load %arg4[%c0_7, %c0_8] : memref<8x8xf32, #tpu.memory_space<vmem>>, vector<8x8xf32>
    tpu.vector_store %arg4[%c0_7, %c0_8], %20 {strides = array<i32>} : memref<8x8xf32, #tpu.memory_space<vmem>>, vector<8x8xf32>,
    %cst_9 = arith.constant 0.000000e+00 : f32
    %22 = vector.broadcast %cst_9 : f32 to vector<8x8xf32>
    %23 = arith.select %17, %14, %22 : vector<8x8xi1>, vector<8x8xf32>
    %cst_10 = arith.constant dense<0.000000e+00> : vector<8xf32>
    %24 = vector.multi_reduction <add>, %23, %cst_10 [1] : vector<8x8xf32> to vector<8xf32>
    %25 = vector.shape_cast %24 : vector<8xf32> to vector<8x1xf32>
    %cst_11 = arith.constant dense<0.000000e+00> : vector<8xf32>
    %26 = vector.multi_reduction <add>, %8, %cst_11 [1] : vector<8x8xf32> to vector<8xf32>
    %27 = vector.shape_cast %26 : vector<8xf32> to vector<8x1xf32>
    %cst_12 = arith.constant 8.000000e+00 : f32
    %28 = vector.broadcast %cst_12 : f32 to vector<8x1xf32>
    %29 = arith.mulf %28, %12 : vector<8x1xf32>
    %30 = arith.subf %27, %29 : vector<8x1xf32>
    %cst_13 = arith.constant 0.899999976 : f32
    %31 = vector.broadcast %cst_13 : f32 to vector<8x1xf32>
    %32 = arith.mulf %31, %25 : vector<8x1xf32>
    %cst_14 = arith.constant -5.196740e-01 : f32
    %33 = vector.broadcast %cst_14 : f32 to vector<8x1xf32>
    %34 = arith.subf %33, %32 : vector<8x1xf32>
    %35 = arith.subf %30, %25 : vector<8x1xf32>
    %cst_15 = arith.constant 0.0142857144 : f32
    %36 = vector.broadcast %cst_15 : f32 to vector<8x1xf32>
    %37 = arith.mulf %36, %35 : vector<8x1xf32>
    %38 = arith.subf %34, %37 : vector<8x1xf32>
    %39 = tpu.iota {dimensions = array<i32: 0>} : vector<8x1xi32>
    %c8_i32 = arith.constant 8 : i32
    %40 = arith.muli %arg0, %c8_i32 : i32
    %41 = vector.broadcast %40 : i32 to vector<8x1xi32>
    %42 = arith.addi %39, %41 : vector<8x1xi32>
    %c8_i32_16 = arith.constant 8 : i32
    %43 = vector.broadcast %c8_i32_16 : i32 to vector<8x1xi32>
    %44 = arith.cmpi slt, %42, %43 : vector<8x1xi32>
    %cst_17 = arith.constant 0.000000e+00 : f32
    %45 = vector.broadcast %cst_17 : f32 to vector<8x1xf32>
    %46 = arith.select %44, %38, %45 : vector<8x1xi1>, vector<8x1xf32>
    %c0_18 = arith.constant 0 : index
    %c0_19 = arith.constant 0 : index
    %47 = vector.load %arg3[%c0_18, %c0_19] : memref<1x1xf32, #tpu.memory_space<vmem>>, vector<1x1xf32>
    %cst_20 = arith.constant dense<0.000000e+00> : vector<1xf32>
    %48 = vector.multi_reduction <add>, %46, %cst_20 [0] : vector<8x1xf32> to vector<1xf32>
    %49 = vector.shape_cast %48 : vector<1xf32> to vector<1x1xf32>
    %50 = arith.addf %47, %49 : vector<1x1xf32>
    %c0_21 = arith.constant 0 : index
    %c0_22 = arith.constant 0 : index
    %51 = vector.load %arg3[%c0_21, %c0_22] : memref<1x1xf32, #tpu.memory_space<vmem>>, vector<1x1xf32>
    tpu.vector_store %arg3[%c0_21, %c0_22], %50 {strides = array<i32>} : memref<1x1xf32, #tpu.memory_space<vmem>>, vector<1x1xf32>,
    return
  }
  func.func @transform_0(%arg0: i32) -> (i32, i32) {
    %c0_i32 = arith.constant 0 : i32
    %c0_i32_0 = arith.constant 0 : i32
    return %arg0, %c0_i32 : i32, i32
  }
  func.func @transform_1(%arg0: i32) -> (i32, i32) {
    %c0_i32 = arith.constant 0 : i32
    %c0_i32_0 = arith.constant 0 : i32
    return %arg0, %c0_i32 : i32, i32
  }
  func.func @transform_2(%arg0: i32) -> (i32, i32) {
    %c0_i32 = arith.constant 0 : i32
    %c0_i32_0 = arith.constant 0 : i32
    %c0_i32_1 = arith.constant 0 : i32
    return %c0_i32, %c0_i32_0 : i32, i32
  }
  func.func @transform_3(%arg0: i32) -> (i32, i32) {
    %c0_i32 = arith.constant 0 : i32
    %c0_i32_0 = arith.constant 0 : i32
    return %arg0, %c0_i32 : i32, i32
  }
}

</mosaic_0001>

<llo_original>
// kernel: tpu_custom_call.1
$region0: #{tpu_custom_call.1}
  #allocation0 [shape = 'u32[]', space=smem, size = 0x4, offset = 0x4, fixed_abs, tag = 'smem constant byte address 0x4 - core index']
  #allocation1 [shape = 'u32[144,128]{1,0:T(1,128)}', space=vmem, size = 0x12000, scoped, tag = 'internal scratch']
  %s0 = inlined_call_operand.vmem [shape: f32[8,8], index: 0, kind: input, shape index: {}]
  %s1 = inlined_call_operand.vmem [shape: s32[8,1], index: 1, kind: input, shape index: {}]
  %s2 = inlined_call_operand.hbm [shape: f32[1,1], index: 2, kind: output, shape index: {0}]
  %s3 = inlined_call_operand.hbm [shape: f32[8,8], index: 3, kind: output, shape index: {1}]
  %4 = xla_tuple %s2, %s3
  %s5 = sld [smem:[#allocation0]]
  $region30: #{tpu_custom_call.1} parent=0
    _
  %s7 = ssub.s32 1, %s5
  %s8 = scalar_select 0, %s7, %s5
  $region1: #{tpu_custom_call.1} parent=0
    #allocation2 [shape = 'u8[512]{0}', space=vmem, size = 0x400, scoped, tag = 'output window, operand 0, single buffered']
    #allocation3 [shape = 's32[1]{0}', space=sflag, size = 0x4, scoped, tag = 'scoped memory for tpu_custom_call.1']
    #allocation4 [shape = 'u8[4096]{0}', space=vmem, size = 0x1000, scoped, tag = 'output window, operand 1, single buffered']
    #allocation5 [shape = 's32[1]{0}', space=sflag, size = 0x4, scoped, tag = 'scoped memory for tpu_custom_call.1']
    %9 = vsyncpa [#allocation3], 0
    %10 = vsyncpa [#allocation5], 0
    // Predicated region
    $region2: #{tpu_custom_call.1} parent=1 // pred_check
      _
    $region3: #{tpu_custom_call.1} parent=1 // pred_check_branch
      %12 = sbr.rel (0) target = $region5
    $region4: #{tpu_custom_call.1} parent=1 // pred_region
      _
    $region5: #{tpu_custom_call.1} parent=1 // pred_fallthru
      _
    // Predicated region
    $region6: #{tpu_custom_call.1} parent=1 // pred_check
      _
    $region7: #{tpu_custom_call.1} parent=1 // pred_check_branch
      %14 = sbr.rel (0) target = $region9
    $region8: #{tpu_custom_call.1} parent=1 // pred_region
      _
    $region9: #{tpu_custom_call.1} parent=1 // pred_fallthru
      _
    %p15 = scmp.eq.s32.totalorder 0, 0
    // Predicated region
    $region10: #{tpu_custom_call.1} parent=1 // pred_check
      %p16 = pneg %p15
    $region11: #{tpu_custom_call.1} parent=1 // pred_check_branch
      %18 = sbr.rel (%p16) target = $region13
    $region12: #{tpu_custom_call.1} parent=1 // pred_region
      %vm19 = vcmask 0
      %20 = vst.msk [vmem:[#allocation2] sm:$0x1] %vm19, 0.0
    $region13: #{tpu_custom_call.1} parent=1 // pred_fallthru
      _
    %v21 = vld [vmem:[%s0] sm:$0xff]
    %v22 = vld [vmem:[%s1] sm:$0xff]
    %vm23 = vcmask 64512
    %v24 = vsel %vm23, %v21, -inf
    %25 = vmax.xlane.f32.xlu0 %v24
    %v26 = vpop.xlane.xlu0 %25
    %v27 = vsub.f32 %v21, %v26
    %v28 = vmul.f32 %v27, 1.442695
    %v29 = vpow.pop %v28
    %v30 = vsel %vm23, %v29, 0.0
    %31 = vadd.xlane.f32.xlu0 %v30
    %v32 = vpop.xlane.xlu0 %31
    %v33 = vlog2.pop %v32
    %v34 = vmul.f32 %v33, 0.6931472
    %v35 = vsub.f32 %v27, %v34
    %v36 = vlaneseq
    %v37 = vand.u32 %v36, 127
    %38 = vset.pattern.permute.xlu0 0
    %39 = vperm.xlu0 %38, %v22
    %v40 = vpop.permute.xlu0 %39
    %vm41 = vcmp.eq.s32.totalorder %v37, %v40
    %v42 = vsel %vm41, 0.9, 0.014285714
    %43 = vst.msk [vmem:[#allocation4] sm:$0xff] %vm23, %v42
    %v44 = vsel %vm41, %v35, 0.0
    %v45 = vsel %vm23, %v44, 0.0
    %46 = vadd.xlane.f32.xlu0 %v45
    %v47 = vpop.xlane.xlu0 %46
    %v48 = vsel %vm23, %v27, 0.0
    %49 = vadd.xlane.f32.xlu0 %v48
    %v50 = vpop.xlane.xlu0 %49
    %v51 = vmul.f32 %v34, 8.0
    %v52 = vsub.f32 %v50, %v51
    %v53 = vmul.f32 %v47, 0.9
    %v54 = vsub.f32 -0.519674, %v53
    %v55 = vsub.f32 %v52, %v47
    %v56 = vmul.f32 %v55, 0.014285714
    %v57 = vsub.f32 %v54, %v56
    %v58 = vlaneseq
    %v59 = vshrl.u32 %v58, 7
    %s60 = smul.u32 0, 8
    %v61 = vstv %s60
    %v62 = vadd.s32 %v59, %v61
    %vm63 = vcmp.lt.s32.totalorder %v62, 8
    %v64 = vsel %vm63, %v57, 0.0
    %v65 = vld [vmem:[#allocation2] sm:$0x1]
    %v66 = vrot.slane %v64, 4
    %v67 = vadd.f32 %v64, %v66
    %v68 = vrot.slane %v67, 2
    %v69 = vadd.f32 %v67, %v68
    %v70 = vrot.slane %v69, 1
    %v71 = vadd.f32 %v69, %v70
    %v72 = vadd.f32 %v65, %v71
    %vm73 = vcmask 0
    %74 = vst.msk [vmem:[#allocation2] sm:$0x1] %vm73, %v72
    // Predicated region
    $region14: #{tpu_custom_call.1} parent=1 // pred_check
      _
    $region15: #{tpu_custom_call.1} parent=1 // pred_check_branch
      %76 = sbr.rel (0) target = $region17
    $region16: #{tpu_custom_call.1} parent=1 // pred_region
      %s78 = ssub.s32 16, 16
      %79 = vsyncadd [#allocation3], %s78
      %s81 = sshll.u32 [#allocation2], 4
      %s82 = int_to_ptr.vmem [resolvable:$true] %s81
      %84 = dma.vmem_to_hbm [thread:$0]  %s82, 16, %s2, [#allocation3]
    $region17: #{tpu_custom_call.1} parent=1 // pred_fallthru
      _
    // Predicated region
    $region18: #{tpu_custom_call.1} parent=1 // pred_check
      _
    $region19: #{tpu_custom_call.1} parent=1 // pred_check_branch
      %86 = sbr.rel (0) target = $region21
    $region20: #{tpu_custom_call.1} parent=1 // pred_region
      %s88 = ssub.s32 128, 128
      %89 = vsyncadd [#allocation5], %s88
      %s91 = sshll.u32 [#allocation4], 4
      %s92 = int_to_ptr.vmem [resolvable:$true] %s91
      %94 = dma.vmem_to_hbm [thread:$0]  %s92, 128, %s3, [#allocation5]
    $region21: #{tpu_custom_call.1} parent=1 // pred_fallthru
      _
    // Predicated region
    $region22: #{tpu_custom_call.1} parent=1 // pred_check
      _
    $region23: #{tpu_custom_call.1} parent=1 // pred_check_branch
      %96 = sbr.rel (0) target = $region25
    $region24: #{tpu_custom_call.1} parent=1 // pred_region
      %97 = dma.done [#allocation3], 16
    $region25: #{tpu_custom_call.1} parent=1 // pred_fallthru
      _
    // Predicated region
    $region26: #{tpu_custom_call.1} parent=1 // pred_check
      _
    $region27: #{tpu_custom_call.1} parent=1 // pred_check_branch
      %99 = sbr.rel (0) target = $region29
    $region28: #{tpu_custom_call.1} parent=1 // pred_region
      %100 = dma.done [#allocation5], 128
    $region29: #{tpu_custom_call.1} parent=1 // pred_fallthru
      _
    %101 = vsyncpa [#allocation3], 1
    %102 = vsyncpa [#allocation5], 1

</llo_original>
